<compile_context>
chip_gen: v6e
topology: v6e:2x2x1
jax: 0.10.0
libtpu: 0.0.40
codegen_flags: <defaults>
</compile_context>

<pallas_src>
import functools

import jax
import jax.numpy as jnp
from jax.experimental import pallas as pl
from jax.experimental.pallas import tpu as pltpu


def _conv1x1_kernel(w_ref, b_ref, x_ref, o_ref, *, use_vpu):
    # w_ref: (C_out, C_in)   resident across grid steps
    # b_ref: (C_out, 1)      resident across grid steps
    # x_ref: (C_in, TL)      batch dim squeezed by BlockSpec
    # o_ref: (C_out, TL)
    w = w_ref[...]
    x = x_ref[...]
    if use_vpu:
        # K is tiny: unrolled broadcast-multiply-add on the VPU, f32 accumulate.
        c_in = w.shape[1]
        acc = w[:, 0:1].astype(jnp.float32) * x[0:1, :].astype(jnp.float32)
        for i in range(1, c_in):
            acc = acc + w[:, i:i + 1].astype(jnp.float32) * x[i:i + 1, :].astype(jnp.float32)
    else:
        acc = jnp.dot(w, x, preferred_element_type=jnp.float32)
    o_ref[...] = (acc + b_ref[...].astype(jnp.float32)).astype(o_ref.dtype)


def _choose_tile_l(L, max_tl=2048):
    """Lane tile over L: a multiple of 128 when L >= 128, else the full extent."""
    if L < 128:
        return L  # block last dim == full array dim -> allowed
    tl = min(max_tl, L)
    return max(128, (tl // 128) * 128)


def encoder_forward(x, weight, bias, *, max_tl=2048):
    """Conv1d(kernel_size=1) forward.

    Args:
      x:      (B, C_in, L)  float32, NCW layout (matches PyTorch).
      weight: (C_out, C_in) float32 (PyTorch conv weight squeezed over kernel dim).
      bias:   (C_out,)      float32.
    Returns:
      (B, C_out, L) float32, NCW layout.
    """
    B, C_in, L = x.shape
    C_out = weight.shape[0]

    TL = _choose_tile_l(L, max_tl)
    n_l = pl.cdiv(L, TL)

    b2d = bias.reshape(C_out, 1)
    use_vpu = C_in <= 8  # K=4-style contraction: skip the MXU entirely.

    itemsize = jnp.dtype(x.dtype).itemsize
    cost = pl.CostEstimate(
        flops=2 * B * L * C_in * C_out,
        transcendentals=0,
        bytes_accessed=(B * C_in * L + B * C_out * L) * itemsize
        + (C_out * C_in + C_out) * itemsize,
    )

    kernel = functools.partial(_conv1x1_kernel, use_vpu=use_vpu)

    out = pl.pallas_call(
        kernel,
        out_shape=jax.ShapeDtypeStruct((B, C_out, L), x.dtype),
        grid_spec=pltpu.PrefetchScalarGridSpec(
            num_scalar_prefetch=0,
            grid=(B, n_l),
            in_specs=[
                # Weight / bias: same block every step -> stays resident in VMEM.
                pl.BlockSpec((C_out, C_in), lambda b, l: (0, 0)),
                pl.BlockSpec((C_out, 1), lambda b, l: (0, 0)),
                # Activations: batch dim squeezed, L tiled on the lane axis.
                pl.BlockSpec((None, C_in, TL), lambda b, l: (b, 0, l)),
            ],
            out_specs=pl.BlockSpec((None, C_out, TL), lambda b, l: (b, 0, l)),
        ),
        compiler_params=pltpu.CompilerParams(
            dimension_semantics=("parallel", "parallel")),
        cost_estimate=cost,
    )(weight, b2d, x)

    return out


if __name__ == "__main__":
    key = jax.random.PRNGKey(0)
    k_x, k_w, k_b = jax.random.split(key, 3)

    B, C_in, L = 2, 4, 16
    hidden = 32

    x = jax.random.normal(k_x, (B, C_in, L), dtype=jnp.float32)
    # Deterministic synthetic parameters (shapes match nn.Conv1d(C_in, hidden, 1)).
    weight = jax.random.normal(k_w, (hidden, C_in), dtype=jnp.float32) * 0.1
    bias = jax.random.normal(k_b, (hidden,), dtype=jnp.float32) * 0.1

    out = encoder_forward(x, weight, bias)
    out = jax.block_until_ready(out)

    # Sanity check against a plain-JAX reference of the same math.
    ref = jnp.einsum("oi,bil->bol", weight, x) + bias[None, :, None]
    assert out.shape == (B, hidden, L)
    assert jnp.allclose(out, ref, atol=1e-5, rtol=1e-5)

    print("KERNEL_OK")
</pallas_src>

<mosaic_0001>
module attributes {stable_mosaic.version = 11 : i64} {
  func.func @_conv1x1_kernel(%arg0: i32, %arg1: i32, %arg2: memref<32x4xf32, #tpu.memory_space<vmem>>, %arg3: memref<32x1xf32, #tpu.memory_space<vmem>>, %arg4: memref<1x4x16xf32, #tpu.memory_space<vmem>>, %arg5: memref<1x32x16xf32, #tpu.memory_space<vmem>>) attributes {dimension_semantics = [#tpu.dimension_semantics<parallel>, #tpu.dimension_semantics<parallel>], iteration_bounds = array<i64: 2, 1>, scalar_prefetch = 0 : i64, scratch_operands = 0 : i64, tpu.core_type = #tpu.core_type<tc>, window_params = [{pipeline_mode = #tpu.pipeline_mode<synchronous>, transform_indices = @transform_0, window_bounds = array<i64: 32, 4>}, {pipeline_mode = #tpu.pipeline_mode<synchronous>, transform_indices = @transform_1, window_bounds = array<i64: 32, 1>}, {transform_indices = @transform_2, window_bounds = array<i64: 1, 4, 16>}, {transform_indices = @transform_3, window_bounds = array<i64: 1, 32, 16>}]} {
    %c0 = arith.constant 0 : index
    %c0_0 = arith.constant 0 : index
    %0 = vector.load %arg2[%c0, %c0_0] : memref<32x4xf32, #tpu.memory_space<vmem>>, vector<32x4xf32>
    %c0_1 = arith.constant 0 : index
    %c0_2 = arith.constant 0 : index
    %c0_3 = arith.constant 0 : index
    %1 = vector.load %arg4[%c0_1, %c0_2, %c0_3] : memref<1x4x16xf32, #tpu.memory_space<vmem>>, vector<1x4x16xf32>
    %2 = vector.shape_cast %1 : vector<1x4x16xf32> to vector<4x16xf32>
    %3 = vector.extract_strided_slice %0 {offsets = [0, 0], sizes = [32, 1], strides = [1, 1]} : vector<32x4xf32> to vector<32x1xf32>
    %4 = vector.extract_strided_slice %2 {offsets = [0, 0], sizes = [1, 16], strides = [1, 1]} : vector<4x16xf32> to vector<1x16xf32>
    %5 = vector.broadcast %3 : vector<32x1xf32> to vector<32x16xf32>
    %6 = vector.broadcast %4 : vector<1x16xf32> to vector<32x16xf32>
    %7 = arith.mulf %5, %6 : vector<32x16xf32>
    %8 = vector.extract_strided_slice %0 {offsets = [0, 1], sizes = [32, 1], strides = [1, 1]} : vector<32x4xf32> to vector<32x1xf32>
    %9 = vector.extract_strided_slice %2 {offsets = [1, 0], sizes = [1, 16], strides = [1, 1]} : vector<4x16xf32> to vector<1x16xf32>
    %10 = vector.broadcast %8 : vector<32x1xf32> to vector<32x16xf32>
    %11 = vector.broadcast %9 : vector<1x16xf32> to vector<32x16xf32>
    %12 = arith.mulf %10, %11 : vector<32x16xf32>
    %13 = arith.addf %7, %12 : vector<32x16xf32>
    %14 = vector.extract_strided_slice %0 {offsets = [0, 2], sizes = [32, 1], strides = [1, 1]} : vector<32x4xf32> to vector<32x1xf32>
    %15 = vector.extract_strided_slice %2 {offsets = [2, 0], sizes = [1, 16], strides = [1, 1]} : vector<4x16xf32> to vector<1x16xf32>
    %16 = vector.broadcast %14 : vector<32x1xf32> to vector<32x16xf32>
    %17 = vector.broadcast %15 : vector<1x16xf32> to vector<32x16xf32>
    %18 = arith.mulf %16, %17 : vector<32x16xf32>
    %19 = arith.addf %13, %18 : vector<32x16xf32>
    %20 = vector.extract_strided_slice %0 {offsets = [0, 3], sizes = [32, 1], strides = [1, 1]} : vector<32x4xf32> to vector<32x1xf32>
    %21 = vector.extract_strided_slice %2 {offsets = [3, 0], sizes = [1, 16], strides = [1, 1]} : vector<4x16xf32> to vector<1x16xf32>
    %22 = vector.broadcast %20 : vector<32x1xf32> to vector<32x16xf32>
    %23 = vector.broadcast %21 : vector<1x16xf32> to vector<32x16xf32>
    %24 = arith.mulf %22, %23 : vector<32x16xf32>
    %25 = arith.addf %19, %24 : vector<32x16xf32>
    %c0_4 = arith.constant 0 : index
    %c0_5 = arith.constant 0 : index
    %26 = vector.load %arg3[%c0_4, %c0_5] : memref<32x1xf32, #tpu.memory_space<vmem>>, vector<32x1xf32>
    %27 = vector.broadcast %26 : vector<32x1xf32> to vector<32x16xf32>
    %28 = arith.addf %25, %27 : vector<32x16xf32>
    %c0_6 = arith.constant 0 : index
    %c0_7 = arith.constant 0 : index
    %c0_8 = arith.constant 0 : index
    %29 = vector.load %arg5[%c0_6, %c0_7, %c0_8] : memref<1x32x16xf32, #tpu.memory_space<vmem>>, vector<1x32x16xf32>
    %30 = vector.shape_cast %29 : vector<1x32x16xf32> to vector<32x16xf32>
    %31 = vector.shape_cast %28 : vector<32x16xf32> to vector<1x32x16xf32>
    tpu.vector_store %arg5[%c0_6, %c0_7, %c0_8], %31 {strides = array<i32>} : memref<1x32x16xf32, #tpu.memory_space<vmem>>, vector<1x32x16xf32>,
    return
  }
  func.func @transform_0(%arg0: i32, %arg1: i32) -> (i32, i32) {
    %c0_i32 = arith.constant 0 : i32
    %c0_i32_0 = arith.constant 0 : i32
    %c0_i32_1 = arith.constant 0 : i32
    return %c0_i32, %c0_i32_0 : i32, i32
  }
  func.func @transform_1(%arg0: i32, %arg1: i32) -> (i32, i32) {
    %c0_i32 = arith.constant 0 : i32
    %c0_i32_0 = arith.constant 0 : i32
    %c0_i32_1 = arith.constant 0 : i32
    return %c0_i32, %c0_i32_0 : i32, i32
  }
  func.func @transform_2(%arg0: i32, %arg1: i32) -> (i32, i32, i32) {
    %c0_i32 = arith.constant 0 : i32
    %c0_i32_0 = arith.constant 0 : i32
    return %arg0, %c0_i32, %arg1 : i32, i32, i32
  }
  func.func @transform_3(%arg0: i32, %arg1: i32) -> (i32, i32, i32) {
    %c0_i32 = arith.constant 0 : i32
    %c0_i32_0 = arith.constant 0 : i32
    return %arg0, %c0_i32, %arg1 : i32, i32, i32
  }
}

</mosaic_0001>

<llo_original>
// kernel: tpu_custom_call.1
$region0: #{tpu_custom_call.1}
  #allocation0 [shape = 'u32[]', space=smem, size = 0x4, offset = 0x4, fixed_abs, tag = 'smem constant byte address 0x4 - core index']
  #allocation1 [shape = 'u32[144,128]{1,0:T(1,128)}', space=vmem, size = 0x12000, scoped, tag = 'internal scratch']
  %s0 = inlined_call_operand.vmem [shape: f32[32,4], index: 0, kind: input, shape index: {}]
  %s1 = inlined_call_operand.vmem [shape: f32[32,1], index: 1, kind: input, shape index: {}]
  %s2 = inlined_call_operand.vmem [shape: f32[2,4,16], index: 2, kind: input, shape index: {}]
  %s3 = inlined_call_operand.vmem [shape: f32[2,32,16], index: 3, kind: output, shape index: {}]
  %s4 = sld [smem:[#allocation0]]
  $region45: #{tpu_custom_call.1} parent=0
    _
  %s6 = ssub.s32 1, %s4
  %s7 = scalar_select 0, %s6, %s4
  loop: start=0, step=1, limit=4
  $region2: #{tpu_custom_call.1} parent=0 // loop_pre_header
    _
  $region3: #{tpu_custom_call.1} parent=0 // loop_header
    %s9 = sphi 0, %s13
    %p10 = scmp.ge.s32.totalorder %s9, 4
    %s16 = sphi 0, %s28
    %s17 = sphi 0, %s24
    %s18 = sphi 0, %s16
    %s19 = sphi 0, %s17
    %s20 = sphi 0, %s18
    %s21 = sphi 0, %s19
    %s29 = sphi 0, %s29
    %s31 = sphi 0, %s29
    %s32 = sphi 0, %s31
    %s46 = sphi 0, %s32
    %s50 = sphi 0, %s50
    %s52 = sphi 0, %s50
    %s53 = sphi 0, %s52
    %s67 = sphi 0, %s53
    %s75 = sphi 0, %s77
    %s78 = sphi 0, %s75
    %s79 = sphi 0, %s78
    %s95 = sphi 0, %s79
    %s103 = sphi 0, %s105
    %s106 = sphi 0, %s103
    %s107 = sphi 0, %s106
    %s123 = sphi 0, %s107
  $region4: #{tpu_custom_call.1} parent=0 // loop_header_branch
    %12 = sbr.rel (%p10) target = $region8
  $region5: #{tpu_custom_call.1} parent=0 // loop_body
    %s14 = ssub.s32 %s9, 1
    %s15 = ssub.s32 %s9, 2
    %s22 = sadd.s32 1, %s17
    %p23 = scmp.ge.s32.totalorder %s22, 1
    %s24 = scalar_select %p23, 0, %s22
    %s25 = sadd.s32 1, %s16
    %s26 = scalar_select %p23, %s25, %s16
    %p27 = scmp.ge.s32.totalorder %s26, 2
    %s28 = scalar_select %p27, 0, %s26
    %s30 = sadd.s32 %s29, 1
    %p33 = scmp.eq.s32.totalorder %s9, 1
    %p34 = scmp.ne.s32.totalorder %s29, %s31
    %p35 = scmp.eq.s32.totalorder %s9, 0
    %p36 = por %p34, %p35
    %p37 = scmp.ne.s32.totalorder %s29, %s31
    %p38 = scmp.eq.s32.totalorder %s14, 1
    %p39 = por %p37, %p38
    %p40 = scmp.ne.s32.totalorder %s31, %s32
    %p41 = scmp.eq.s32.totalorder %s14, 0
    %p42 = por %p40, %p41
    %p43 = scmp.ne.s32.totalorder %s31, %s32
    %p44 = scmp.eq.s32.totalorder %s15, 1
    %p45 = por %p43, %p44
    %p47 = scmp.ne.s32.totalorder %s32, %s46
    %p48 = scmp.eq.s32.totalorder %s15, 0
    %p49 = por %p47, %p48
    %s51 = sadd.s32 %s50, 1
    %p54 = scmp.eq.s32.totalorder %s9, 1
    %p55 = scmp.ne.s32.totalorder %s50, %s52
    %p56 = scmp.eq.s32.totalorder %s9, 0
    %p57 = por %p55, %p56
    %p58 = scmp.ne.s32.totalorder %s50, %s52
    %p59 = scmp.eq.s32.totalorder %s14, 1
    %p60 = por %p58, %p59
    %p61 = scmp.ne.s32.totalorder %s52, %s53
    %p62 = scmp.eq.s32.totalorder %s14, 0
    %p63 = por %p61, %p62
    %p64 = scmp.ne.s32.totalorder %s52, %s53
    %p65 = scmp.eq.s32.totalorder %s15, 1
    %p66 = por %p64, %p65
    %p68 = scmp.ne.s32.totalorder %s53, %s67
    %p69 = scmp.eq.s32.totalorder %s15, 0
    %p70 = por %p68, %p69
    %s71 = ssub.s32 %s16, %s28
    %s72 = ssub.s32 %s17, %s24
    %s73 = sor.u32 %s71, %s72
    %p74 = scmp.eq.s32.totalorder %s73, 0
    %s76 = sadd.s32 %s75, 1
    %s77 = scalar_select %p74, %s75, %s76
    %p80 = pneg %p74
    %p81 = scmp.eq.s32.totalorder %s9, 1
    %p82 = por %p80, %p81
    %p83 = scmp.ne.s32.totalorder %s75, %s78
    %p84 = scmp.eq.s32.totalorder %s9, 0
    %p85 = por %p83, %p84
    %p86 = scmp.ne.s32.totalorder %s75, %s78
    %p87 = scmp.eq.s32.totalorder %s14, 1
    %p88 = por %p86, %p87
    %p89 = scmp.ne.s32.totalorder %s78, %s79
    %p90 = scmp.eq.s32.totalorder %s14, 0
    %p91 = por %p89, %p90
    %p92 = scmp.ne.s32.totalorder %s78, %s79
    %p93 = scmp.eq.s32.totalorder %s15, 1
    %p94 = por %p92, %p93
    %p96 = scmp.ne.s32.totalorder %s79, %s95
    %p97 = scmp.eq.s32.totalorder %s15, 0
    %p98 = por %p96, %p97
    %s99 = ssub.s32 %s16, %s28
    %s100 = ssub.s32 %s17, %s24
    %s101 = sor.u32 %s99, %s100
    %p102 = scmp.eq.s32.totalorder %s101, 0
    %s104 = sadd.s32 %s103, 1
    %s105 = scalar_select %p102, %s103, %s104
    %p108 = pneg %p102
    %p109 = scmp.eq.s32.totalorder %s9, 1
    %p110 = por %p108, %p109
    %p111 = scmp.ne.s32.totalorder %s103, %s106
    %p112 = scmp.eq.s32.totalorder %s9, 0
    %p113 = por %p111, %p112
    %p114 = scmp.ne.s32.totalorder %s103, %s106
    %p115 = scmp.eq.s32.totalorder %s14, 1
    %p116 = por %p114, %p115
    %p117 = scmp.ne.s32.totalorder %s106, %s107
    %p118 = scmp.eq.s32.totalorder %s14, 0
    %p119 = por %p117, %p118
    %p120 = scmp.ne.s32.totalorder %s106, %s107
    %p121 = scmp.eq.s32.totalorder %s15, 1
    %p122 = por %p120, %p121
    %p124 = scmp.ne.s32.totalorder %s107, %s123
    %p125 = scmp.eq.s32.totalorder %s15, 0
    %p126 = por %p124, %p125
    %p127 = scmp.le.s32.totalorder 1, %s9
    %p128 = scmp.lt.s32.totalorder %s9, 3
    %p129 = pnand %p127, %p128
    %p130 = pneg %p129
    // Predicated region
    $region9: #{tpu_custom_call.1} parent=5 // pred_check
      _
    $region10: #{tpu_custom_call.1} parent=5 // pred_check_branch
      %132 = sbr.rel (%p129) target = $region12
    $region11: #{tpu_custom_call.1} parent=5 // pred_region
      %s133 = ssub.s32 %s9, 1
      // Predicated region
      $region13: #{tpu_custom_call.1} parent=11 // pred_check
        %p134 = pneg %p42
      $region14: #{tpu_custom_call.1} parent=11 // pred_check_branch
        %136 = sbr.rel (%p134) target = $region16
      $region15: #{tpu_custom_call.1} parent=11 // pred_region
        _
      $region16: #{tpu_custom_call.1} parent=11 // pred_fallthru
        _
      // Predicated region
      $region17: #{tpu_custom_call.1} parent=11 // pred_check
        %p137 = pneg %p63
      $region18: #{tpu_custom_call.1} parent=11 // pred_check_branch
        %139 = sbr.rel (%p137) target = $region20
      $region19: #{tpu_custom_call.1} parent=11 // pred_region
        _
      $region20: #{tpu_custom_call.1} parent=11 // pred_fallthru
        _
    $region12: #{tpu_custom_call.1} parent=5 // pred_fallthru
      _
    %p140 = scmp.lt.s32.totalorder %s9, 2
    // Predicated region
    $region21: #{tpu_custom_call.1} parent=5 // pred_check
      %p141 = pneg %p140
    $region22: #{tpu_custom_call.1} parent=5 // pred_check_branch
      %143 = sbr.rel (%p141) target = $region24
    $region23: #{tpu_custom_call.1} parent=5 // pred_region
      // Predicated region
      $region25: #{tpu_custom_call.1} parent=23 // pred_check
        %p144 = pneg %p85
      $region26: #{tpu_custom_call.1} parent=23 // pred_check_branch
        %146 = sbr.rel (%p144) target = $region28
      $region27: #{tpu_custom_call.1} parent=23 // pred_region
        %p147 = scmp.lt.s32.totalorder %s16, 1
        %s148 = scalar_select %p147, %s16, 1
        %p149 = scmp.lt.s32.totalorder %s17, 0
        %s150 = scalar_select %p149, %s17, 0
        %s151 = sadd.s32 %s150, %s148
        %s152 = smul.addr %s151, 4
        %s153 = scalar_lea.vmem %s2, %s152
      $region28: #{tpu_custom_call.1} parent=23 // pred_fallthru
        _
    $region24: #{tpu_custom_call.1} parent=5 // pred_fallthru
      _
    %p154 = scmp.le.s32.totalorder 1, %s9
    %p155 = scmp.lt.s32.totalorder %s9, 3
    %p156 = pnand %p154, %p155
    %p157 = pneg %p156
    // Predicated region
    $region29: #{tpu_custom_call.1} parent=5 // pred_check
      _
    $region30: #{tpu_custom_call.1} parent=5 // pred_check_branch
      %159 = sbr.rel (%p156) target = $region32
    $region31: #{tpu_custom_call.1} parent=5 // pred_region
      %s160 = ssub.s32 %s9, 1
      %p161 = pneg %p42
      %p162 = pneg %p39
      %p163 = pneg %p63
      %p164 = pneg %p60
      %p165 = scmp.lt.s32.totalorder %s18, 1
      %s166 = scalar_select %p165, %s18, 1
      %p167 = scmp.lt.s32.totalorder %s19, 0
      %s168 = scalar_select %p167, %s19, 0
      %s169 = sadd.s32 %s168, %s166
      %s170 = smul.addr %s169, 4
      %s171 = scalar_lea.vmem %s2, %s170
      %p172 = pneg %p91
      %p173 = pneg %p88
      %p174 = pneg %p119
      %p175 = pneg %p116
      %p176 = scmp.lt.s32.totalorder %s18, 1
      %s177 = scalar_select %p176, %s18, 1
      %p178 = scmp.lt.s32.totalorder %s19, 0
      %s179 = scalar_select %p178, %s19, 0
      %s180 = smul.addr %s177, 4
      %s181 = sadd.s32 %s179, %s180
      %s182 = smul.addr %s181, 8
      %s183 = scalar_lea.vmem %s3, %s182
      %p184 = scmp.lt.s32.totalorder %s18, 1
      %s185 = scalar_select %p184, %s18, 1
      %p186 = scmp.lt.s32.totalorder %s19, 0
      %s187 = scalar_select %p186, %s19, 0
      %s188 = sadd.s32 %s187, %s185
      %s189 = smul.addr %s188, 4
      %s190 = scalar_lea.vmem %s2, %s189
      %p191 = scmp.lt.s32.totalorder %s18, 1
      %s192 = scalar_select %p191, %s18, 1
      %p193 = scmp.lt.s32.totalorder %s19, 0
      %s194 = scalar_select %p193, %s19, 0
      %s195 = smul.addr %s192, 4
      %s196 = sadd.s32 %s194, %s195
      %s197 = smul.addr %s196, 8
      %s198 = scalar_lea.vmem %s3, %s197
      %v199 = vld [vmem:[%s0] sm:$0xff]
      %v200 = vld [vmem:[%s0 + $0x8] sm:$0xff]
      %v201 = vld [vmem:[%s0 + $0x10] sm:$0xff]
      %v202 = vld [vmem:[%s0 + $0x18] sm:$0xff]
      %v203 = vld [vmem:[%s190] sm:$0xf]
      %205 = vset.pattern.permute.xlu0 0
      %206 = vperm.xlu0 %205, %v199
      %v207 = vpop.permute.xlu0 %206
      %210 = vset.pattern.permute.xlu0 0
      %211 = vperm.xlu0 %210, %v200
      %v212 = vpop.permute.xlu0 %211
      %215 = vset.pattern.permute.xlu0 0
      %216 = vperm.xlu0 %215, %v201
      %v217 = vpop.permute.xlu0 %216
      %220 = vset.pattern.permute.xlu0 0
      %221 = vperm.xlu0 %220, %v202
      %v222 = vpop.permute.xlu0 %221
      %v224 = vlaneseq
      %v225 = vshrl.u32 %v224, 7
      %v226 = vsub.s32 0, %v225
      %v227 = vrot.slane %v203, %v226
      %v228 = vmul.f32 %v207, %v227
      %v229 = vmul.f32 %v212, %v227
      %v230 = vmul.f32 %v217, %v227
      %v231 = vmul.f32 %v222, %v227
      %232 = vset.pattern.permute.xlu0 1
      %233 = vperm.xlu0 %232, %v199
      %v234 = vpop.permute.xlu0 %233
      %236 = vset.pattern.permute.xlu0 1
      %237 = vperm.xlu0 %236, %v200
      %v238 = vpop.permute.xlu0 %237
      %240 = vset.pattern.permute.xlu0 1
      %241 = vperm.xlu0 %240, %v201
      %v242 = vpop.permute.xlu0 %241
      %244 = vset.pattern.permute.xlu0 1
      %245 = vperm.xlu0 %244, %v202
      %v246 = vpop.permute.xlu0 %245
      %v248 = vlaneseq
      %v249 = vshrl.u32 %v248, 7
      %v250 = vsub.s32 1, %v249
      %v251 = vrot.slane %v203, %v250
      %v252 = vmul.f32 %v234, %v251
      %v253 = vmul.f32 %v238, %v251
      %v254 = vmul.f32 %v242, %v251
      %v255 = vmul.f32 %v246, %v251
      %v256 = vadd.f32 %v228, %v252
      %v257 = vadd.f32 %v229, %v253
      %v258 = vadd.f32 %v230, %v254
      %v259 = vadd.f32 %v231, %v255
      %260 = vset.pattern.permute.xlu0 2
      %261 = vperm.xlu0 %260, %v199
      %v262 = vpop.permute.xlu0 %261
      %264 = vset.pattern.permute.xlu0 2
      %265 = vperm.xlu0 %264, %v200
      %v266 = vpop.permute.xlu0 %265
      %268 = vset.pattern.permute.xlu0 2
      %269 = vperm.xlu0 %268, %v201
      %v270 = vpop.permute.xlu0 %269
      %272 = vset.pattern.permute.xlu0 2
      %273 = vperm.xlu0 %272, %v202
      %v274 = vpop.permute.xlu0 %273
      %v276 = vlaneseq
      %v277 = vshrl.u32 %v276, 7
      %v278 = vsub.s32 2, %v277
      %v279 = vrot.slane %v203, %v278
      %v280 = vmul.f32 %v262, %v279
      %v281 = vmul.f32 %v266, %v279
      %v282 = vmul.f32 %v270, %v279
      %v283 = vmul.f32 %v274, %v279
      %v284 = vadd.f32 %v256, %v280
      %v285 = vadd.f32 %v257, %v281
      %v286 = vadd.f32 %v258, %v282
      %v287 = vadd.f32 %v259, %v283
      %288 = vset.pattern.permute.xlu0 3
      %289 = vperm.xlu0 %288, %v199
      %v290 = vpop.permute.xlu0 %289
      %292 = vset.pattern.permute.xlu0 3
      %293 = vperm.xlu0 %292, %v200
      %v294 = vpop.permute.xlu0 %293
      %296 = vset.pattern.permute.xlu0 3
      %297 = vperm.xlu0 %296, %v201
      %v298 = vpop.permute.xlu0 %297
      %300 = vset.pattern.permute.xlu0 3
      %301 = vperm.xlu0 %300, %v202
      %v302 = vpop.permute.xlu0 %301
      %v304 = vlaneseq
      %v305 = vshrl.u32 %v304, 7
      %v306 = vsub.s32 3, %v305
      %v307 = vrot.slane %v203, %v306
      %v308 = vmul.f32 %v290, %v307
      %v309 = vmul.f32 %v294, %v307
      %v310 = vmul.f32 %v298, %v307
      %v311 = vmul.f32 %v302, %v307
      %v312 = vadd.f32 %v284, %v308
      %v313 = vadd.f32 %v285, %v309
      %v314 = vadd.f32 %v286, %v310
      %v315 = vadd.f32 %v287, %v311
      %v316 = vld [vmem:[%s1] sm:$0xff]
      %v317 = vld [vmem:[%s1 + $0x8] sm:$0xff]
      %v318 = vld [vmem:[%s1 + $0x10] sm:$0xff]
      %v319 = vld [vmem:[%s1 + $0x18] sm:$0xff]
      %321 = vset.pattern.permute.xlu0 0
      %322 = vperm.xlu0 %321, %v316
      %v323 = vpop.permute.xlu0 %322
      %326 = vset.pattern.permute.xlu0 0
      %327 = vperm.xlu0 %326, %v317
      %v328 = vpop.permute.xlu0 %327
      %331 = vset.pattern.permute.xlu0 0
      %332 = vperm.xlu0 %331, %v318
      %v333 = vpop.permute.xlu0 %332
      %336 = vset.pattern.permute.xlu0 0
      %337 = vperm.xlu0 %336, %v319
      %v338 = vpop.permute.xlu0 %337
      %v340 = vadd.f32 %v312, %v323
      %v341 = vadd.f32 %v313, %v328
      %v342 = vadd.f32 %v314, %v333
      %v343 = vadd.f32 %v315, %v338
      %vm344 = vcmask 130048
      %345 = vst.msk [vmem:[%s198] sm:$0xff] %vm344, %v340
      %346 = vst.msk [vmem:[%s198 + $0x8] sm:$0xff] %vm344, %v341
      %347 = vst.msk [vmem:[%s198 + $0x10] sm:$0xff] %vm344, %v342
      %348 = vst.msk [vmem:[%s198 + $0x18] sm:$0xff] %vm344, %v343
      %p349 = scmp.lt.s32.totalorder %s18, 1
      %s350 = scalar_select %p349, %s18, 1
      %p351 = scmp.lt.s32.totalorder %s19, 0
      %s352 = scalar_select %p351, %s19, 0
      %s353 = smul.addr %s350, 4
      %s354 = sadd.s32 %s352, %s353
      %s355 = smul.addr %s354, 8
      %s356 = scalar_lea.vmem %s3, %s355
      // Predicated region
      $region33: #{tpu_custom_call.1} parent=31 // pred_check
        %p357 = pneg %p116
      $region34: #{tpu_custom_call.1} parent=31 // pred_check_branch
        %359 = sbr.rel (%p357) target = $region36
      $region35: #{tpu_custom_call.1} parent=31 // pred_region
        _
      $region36: #{tpu_custom_call.1} parent=31 // pred_fallthru
        _
    $region32: #{tpu_custom_call.1} parent=5 // pred_fallthru
      _
    %p360 = scmp.le.s32.totalorder 2, %s9
    // Predicated region
    $region37: #{tpu_custom_call.1} parent=5 // pred_check
      %p361 = pneg %p360
    $region38: #{tpu_custom_call.1} parent=5 // pred_check_branch
      %363 = sbr.rel (%p361) target = $region40
    $region39: #{tpu_custom_call.1} parent=5 // pred_region
      %s364 = ssub.s32 %s9, 2
      // Predicated region
      $region41: #{tpu_custom_call.1} parent=39 // pred_check
        %p365 = pneg %p122
      $region42: #{tpu_custom_call.1} parent=39 // pred_check_branch
        %367 = sbr.rel (%p365) target = $region44
      $region43: #{tpu_custom_call.1} parent=39 // pred_region
        %p368 = scmp.lt.s32.totalorder %s20, 1
        %s369 = scalar_select %p368, %s20, 1
        %p370 = scmp.lt.s32.totalorder %s21, 0
        %s371 = scalar_select %p370, %s21, 0
        %s372 = smul.addr %s369, 4
        %s373 = sadd.s32 %s371, %s372
        %s374 = smul.addr %s373, 8
        %s375 = scalar_lea.vmem %s3, %s374
      $region44: #{tpu_custom_call.1} parent=39 // pred_fallthru
        _
    $region40: #{tpu_custom_call.1} parent=5 // pred_fallthru
      _
  $region6: #{tpu_custom_call.1} parent=0 // loop_footer
    %s13 = sadd.s32 1, %s9
  $region7: #{tpu_custom_call.1} parent=0 // loop_footer_branch
    %8 = sbr.rel target = $region3
  $region8: #{tpu_custom_call.1} parent=0 // loop_exit
    _

</llo_original>
